<compile_context>
chip_gen: v5e
topology: v5e:2x2
jax: 0.10.0
libtpu: 0.0.40
codegen_flags: <defaults>
</compile_context>

<pallas_src>
import jax
import jax.numpy as jnp
import numpy as np
from jax.experimental import pallas as pl
from jax.experimental.pallas import tpu as pltpu


# --------------------------------------------------------------------------
# Loss-kernel tiling planner
#   Factor HW = nc * n_h * sub * lanes  (exact, no masking needed), where
#     nc    : megacore split of the reduction (2 when possible, else 1)
#     lanes : last-dim extent (multiple of 128 when HW allows it)
#     sub   : sublane extent per block (multiple of 8, or the full extent)
#     n_h   : number of reduction steps per (core, row)
# --------------------------------------------------------------------------
def _plan_loss_tiling(hw, elem_cap=512 * 1024):
    lanes = None
    for cand in (2048, 1024, 512, 256, 128):
        if hw % cand:
            continue
        if lanes is None:
            lanes = cand
        if (hw // cand) % 2 == 0:       # prefer a width that lets both TCs split HW
            lanes = cand
            break
    if lanes is None:                   # HW not a multiple of 128: single tiny block
        return 1, hw, 1, 1
    rows = hw // lanes
    nc = 2 if rows % 2 == 0 else 1
    rows_pc = rows // nc
    if rows_pc * lanes <= elem_cap:
        sub = rows_pc                   # full extent per (core, row): fewest steps
    else:
        subs = [d for d in range(8, rows_pc + 1, 8)
                if rows_pc % d == 0 and d * lanes <= elem_cap]
        sub = max(subs) if subs else rows_pc
    return nc, lanes, sub, rows_pc // sub


# --------------------------------------------------------------------------
# Pallas kernel: SAM loss hot path
#   bce = BCEWithLogitsLoss(pred, gt)           (mean over all elements)
#   iou = _iou_loss(pred, gt) (no ignored_map)  (mean over B*C rows)
#
# Grid: (nc, R, n_h) = (core split [parallel], row [parallel], HW chunk
# [arbitrary, last]).  The output block index ignores the HW axis, so it stays
# resident in VMEM and acts as the accumulator (no scratch, no finalize copy).
# Inputs arrive in narrow dtypes (pred bf16, gt native) and are cast to f32
# inside the kernel.  One shared transcendental e = exp(-|x|) feeds both the
# BCE softplus term and the sigmoid.
# --------------------------------------------------------------------------
def _sam_loss_kernel(pred_ref, tgt_ref, out_ref):
    hh = pl.program_id(2)

    @pl.when(hh == 0)
    def _():
        out_ref[...] = jnp.zeros_like(out_ref)

    x = pred_ref[...].astype(jnp.float32)
    t = tgt_ref[...].astype(jnp.float32)

    # Shared transcendental: e = exp(-|x|) feeds both softplus and sigmoid.
    e = jnp.exp(-jnp.abs(x))

    # BCEWithLogitsLoss, numerically stable: max(x,0) - x*t + log1p(exp(-|x|))
    bce = jnp.maximum(x, 0.0) - x * t + jnp.log1p(e)

    # sigmoid(x) via the shared e:  x>=0 -> 1/(1+e),  x<0 -> e/(1+e)
    inv = pl.reciprocal(1.0 + e, approx=True)
    p = jnp.where(x >= 0.0, inv, e * inv)

    # Single pass over the tile: all three partial reductions.
    bce_s = jnp.sum(bce)
    inter_s = jnp.sum(p * t)
    pu_s = jnp.sum(p + t)

    # Pack the three scalars into lanes 0/1/2 of the resident output block.
    lane = jax.lax.broadcasted_iota(jnp.int32, out_ref.shape, 3)
    out_ref[...] += (jnp.where(lane == 0, bce_s, 0.0)
                     + jnp.where(lane == 1, inter_s, 0.0)
                     + jnp.where(lane == 2, pu_s, 0.0))


def sam_losses(pred_mask_nchw, gt_mask_nchw, *, elem_cap=512 * 1024,
               pred_stream_dtype=jnp.bfloat16):
    """Returns (bce_loss, iou_loss) matching BCEWithLogitsLoss + _iou_loss."""
    b, c, h, w = pred_mask_nchw.shape
    R = b * c
    HW = h * w
    nc, lanes, sub, n_h = _plan_loss_tiling(HW, elem_cap)

    # Reshape each row's HW into (nc, n_h*sub, lanes) — exact split, no masks,
    # full (8,128) vreg occupancy even when R < 8.
    pred4d = pred_mask_nchw.reshape(R, nc, n_h * sub, lanes)
    if pred_stream_dtype is not None:
        pred4d = pred4d.astype(pred_stream_dtype)     # narrow HBM read traffic
    # gt stays in its caller-provided dtype (bf16 is exact for hard 0/1 masks;
    # pass f32 if the ground truth is a soft mask).
    tgt4d = gt_mask_nchw.reshape(R, nc, n_h * sub, lanes)

    out = pl.pallas_call(
        _sam_loss_kernel,
        out_shape=jax.ShapeDtypeStruct((nc, R, 8, 128), jnp.float32),
        grid=(nc, R, n_h),
        in_specs=[
            pl.BlockSpec((1, 1, sub, lanes), lambda c_, r, hh: (r, c_, hh, 0)),
            pl.BlockSpec((1, 1, sub, lanes), lambda c_, r, hh: (r, c_, hh, 0)),
        ],
        out_specs=pl.BlockSpec((1, 1, 8, 128), lambda c_, r, hh: (c_, r, 0, 0)),
        compiler_params=pltpu.CompilerParams(
            dimension_semantics=("parallel", "parallel", "arbitrary")),
    )(pred4d, tgt4d)

    # Tiny final combine: sum the per-core partials, normalize with the TRUE
    # global sizes.
    totals = jnp.sum(out, axis=0)[:, 0, :]            # (R, 128)
    bce = jnp.sum(totals[:, 0]) / (R * HW)
    inter = totals[:, 1]
    union = totals[:, 2] - inter
    iou = jnp.mean(1.0 - inter / (union + 1e-07))
    return bce, iou


# --------------------------------------------------------------------------
# dense_embeddings = no_mask_embed.weight.reshape(1,-1,1,1)
#                      .expand(bs, -1, S, S)
# Per perf review: a dedicated Pallas kernel here was pure HBM writeback with
# zero compute; a jnp broadcast is fusible/free for XLA, so use that.
# --------------------------------------------------------------------------
def dense_no_mask_embeddings(weight, bs, embed_size):
    d = weight.shape[1]
    return jnp.broadcast_to(weight.reshape(1, d, 1, 1),
                            (bs, d, embed_size, embed_size))   # NCHW, f32


# --------------------------------------------------------------------------
# Glue: postprocess_masks (two bilinear resizes, as in the PyTorch module)
# TODO(synk): at real SAM sizes the f32 intermediate of the first resize
#             dominates HBM traffic; keep it bf16 / fuse with the loss kernel
#             if profiling shows it on the critical path.
# --------------------------------------------------------------------------
def postprocess_masks(masks, img_size, input_size, original_size):
    b, c, _, _ = masks.shape
    m = jax.image.resize(masks, (b, c, img_size, img_size), method="bilinear")
    if input_size < img_size:           # crop is a no-op when input==img size
        m = m[..., :input_size, :input_size]
    m = jax.image.resize(m, (b, c, original_size[0], original_size[1]),
                         method="bilinear")
    return m


# --------------------------------------------------------------------------
# SAM (Pallas) — the parts of forward()/backward_G() that are specified
# --------------------------------------------------------------------------
class SAMPallas:
    def __init__(self, inp_size, patch_size, prompt_embed_dim, key):
        self.inp_size = inp_size
        self.prompt_embed_dim = prompt_embed_dim
        self.image_embedding_size = inp_size // patch_size
        # nn.Embedding(1, prompt_embed_dim).weight — deterministic init
        self.no_mask_embed_weight = 0.02 * jax.random.normal(
            key, (1, prompt_embed_dim), dtype=jnp.float32)

    def forward_and_loss(self, lowres_mask_logits, gt_mask):
        bs = lowres_mask_logits.shape[0]
        # sparse_embeddings = empty((bs, 0, D)) — nothing to compute
        dense_embeddings = dense_no_mask_embeddings(
            self.no_mask_embed_weight, bs, self.image_embedding_size)
        # TODO(synk): ImageEncoderViT, PromptEncoder.get_dense_pe, MaskDecoder
        #             and TwoWayTransformer definitions are not provided in the
        #             module source, so `lowres_mask_logits` stands in for the
        #             mask-decoder output here.
        pred_mask = postprocess_masks(
            lowres_mask_logits, self.inp_size, self.inp_size, (224, 224))
        bce, iou = sam_losses(pred_mask, gt_mask)   # loss_mode == 'iou' path
        loss_g = bce + iou
        return pred_mask, dense_embeddings, bce, iou, loss_g


# --------------------------------------------------------------------------
# Pure-JAX references for verification
# --------------------------------------------------------------------------
def _ref_losses(pred, tgt):
    x = pred.astype(jnp.float32)
    t = tgt.astype(jnp.float32)
    bce = jnp.mean(jnp.maximum(x, 0.0) - x * t + jnp.log1p(jnp.exp(-jnp.abs(x))))
    p = jax.nn.sigmoid(x)
    inter = jnp.sum(p * t, axis=(2, 3))
    union = jnp.sum(p + t, axis=(2, 3)) - inter
    iou = jnp.mean(1.0 - inter / (union + 1e-07))
    return bce, iou


if __name__ == "__main__":
    key = jax.random.PRNGKey(0)
    k_w, k_pred, k_gt = jax.random.split(key, 3)

    # Small, SAM-consistent shapes
    inp_size = 32
    patch_size = 4
    prompt_embed_dim = 32
    bs = 2

    model = SAMPallas(inp_size, patch_size, prompt_embed_dim, k_w)

    # Stand-in for the mask-decoder low-res logits (B, 1, S, S)
    s = inp_size // patch_size
    lowres_logits = jax.random.normal(k_pred, (bs, 1, s, s), dtype=jnp.float32)
    # Ground-truth mask at original size (B, 1, 224, 224); streamed as bf16
    # (exact for a hard 0/1 mask).
    gt_mask = (jax.random.uniform(k_gt, (bs, 1, 224, 224)) > 0.5
               ).astype(jnp.bfloat16)

    pred_mask, dense_emb, bce, iou, loss_g = model.forward_and_loss(
        lowres_logits, gt_mask)
    jax.block_until_ready((pred_mask, dense_emb, bce, iou, loss_g))

    # ---- verification against pure-JAX references ----
    ref_dense = jnp.broadcast_to(
        model.no_mask_embed_weight.reshape(1, -1, 1, 1),
        (bs, prompt_embed_dim, s, s))
    assert dense_emb.shape == (bs, prompt_embed_dim, s, s)
    assert np.allclose(np.asarray(dense_emb), np.asarray(ref_dense),
                       rtol=1e-6, atol=1e-6)

    ref_bce, ref_iou = _ref_losses(pred_mask, gt_mask)
    assert pred_mask.shape == (bs, 1, 224, 224)
    # Tolerances loosened for bf16 pred streaming + approx reciprocal.
    assert np.allclose(float(bce), float(ref_bce), rtol=2e-2, atol=2e-3), \
        (float(bce), float(ref_bce))
    assert np.allclose(float(iou), float(ref_iou), rtol=2e-2, atol=2e-3), \
        (float(iou), float(ref_iou))

    print("KERNEL_OK")
</pallas_src>

<mosaic_0001>
module attributes {stable_mosaic.version = 11 : i64} {
  func.func @_sam_loss_kernel(%arg0: i32, %arg1: i32, %arg2: i32, %arg3: memref<1x1x49x512xbf16, #tpu.memory_space<vmem>>, %arg4: memref<1x1x49x512xbf16, #tpu.memory_space<vmem>>, %arg5: memref<1x1x8x128xf32, #tpu.memory_space<vmem>>) attributes {dimension_semantics = [#tpu.dimension_semantics<parallel>, #tpu.dimension_semantics<parallel>, #tpu.dimension_semantics<arbitrary>], iteration_bounds = array<i64: 2, 2, 1>, scalar_prefetch = 0 : i64, scratch_operands = 0 : i64, tpu.core_type = #tpu.core_type<tc>, window_params = [{transform_indices = @transform_0, window_bounds = array<i64: 1, 1, 49, 512>}, {transform_indices = @transform_1, window_bounds = array<i64: 1, 1, 49, 512>}, {transform_indices = @transform_2, window_bounds = array<i64: 1, 1, 8, 128>}]} {
    %c0_i32 = arith.constant 0 : i32
    %0 = arith.cmpi eq, %arg2, %c0_i32 : i32
    %1 = arith.extui %0 : i1 to i32
    %c0_i32_0 = arith.constant 0 : i32
    %2 = arith.cmpi ne, %1, %c0_i32_0 : i32
    scf.if %2 {
      %cst_26 = arith.constant 0.000000e+00 : f32
      %59 = vector.broadcast %cst_26 : f32 to vector<1x1x8x128xf32>
      %c0_27 = arith.constant 0 : index
      %c0_28 = arith.constant 0 : index
      %c0_29 = arith.constant 0 : index
      %c0_30 = arith.constant 0 : index
      %60 = vector.load %arg5[%c0_27, %c0_28, %c0_29, %c0_30] : memref<1x1x8x128xf32, #tpu.memory_space<vmem>>, vector<1x1x8x128xf32>
      tpu.vector_store %arg5[%c0_27, %c0_28, %c0_29, %c0_30], %59 {strides = array<i32>} : memref<1x1x8x128xf32, #tpu.memory_space<vmem>>, vector<1x1x8x128xf32>,
    } else {
    }
    %c0 = arith.constant 0 : index
    %c0_1 = arith.constant 0 : index
    %c0_2 = arith.constant 0 : index
    %c0_3 = arith.constant 0 : index
    %3 = vector.load %arg3[%c0, %c0_1, %c0_2, %c0_3] : memref<1x1x49x512xbf16, #tpu.memory_space<vmem>>, vector<1x1x49x512xbf16>
    %4 = arith.extf %3 : vector<1x1x49x512xbf16> to vector<1x1x49x512xf32>
    %c0_4 = arith.constant 0 : index
    %c0_5 = arith.constant 0 : index
    %c0_6 = arith.constant 0 : index
    %c0_7 = arith.constant 0 : index
    %5 = vector.load %arg4[%c0_4, %c0_5, %c0_6, %c0_7] : memref<1x1x49x512xbf16, #tpu.memory_space<vmem>>, vector<1x1x49x512xbf16>
    %6 = arith.extf %5 : vector<1x1x49x512xbf16> to vector<1x1x49x512xf32>
    %7 = math.absf %4 : vector<1x1x49x512xf32>
    %cst = arith.constant 0.000000e+00 : f32
    %8 = vector.broadcast %cst : f32 to vector<1x1x49x512xf32>
    %9 = arith.subf %8, %7 : vector<1x1x49x512xf32>
    %10 = math.exp %9 : vector<1x1x49x512xf32>
    %cst_8 = arith.constant 0.000000e+00 : f32
    %11 = vector.broadcast %cst_8 : f32 to vector<1x1x49x512xf32>
    %12 = arith.maximumf %4, %11 : vector<1x1x49x512xf32>
    %13 = arith.mulf %4, %6 : vector<1x1x49x512xf32>
    %14 = arith.subf %12, %13 : vector<1x1x49x512xf32>
    %15 = math.log1p %10 : vector<1x1x49x512xf32>
    %16 = arith.addf %14, %15 : vector<1x1x49x512xf32>
    %cst_9 = arith.constant 1.000000e+00 : f32
    %17 = vector.broadcast %cst_9 : f32 to vector<1x1x49x512xf32>
    %18 = arith.addf %17, %10 : vector<1x1x49x512xf32>
    %19 = tpu.reciprocal %18 {approx = true} : vector<1x1x49x512xf32> -> vector<1x1x49x512xf32>
    %cst_10 = arith.constant 0.000000e+00 : f32
    %20 = vector.broadcast %cst_10 : f32 to vector<1x1x49x512xf32>
    %21 = arith.cmpf oge, %4, %20 : vector<1x1x49x512xf32>
    %22 = arith.mulf %10, %19 : vector<1x1x49x512xf32>
    %23 = arith.select %21, %19, %22 : vector<1x1x49x512xi1>, vector<1x1x49x512xf32>
    %24 = vector.shape_cast %16 : vector<1x1x49x512xf32> to vector<1x1x1x49x512xf32>
    %cst_11 = arith.constant dense<0.000000e+00> : vector<1xf32>
    %25 = vector.multi_reduction <add>, %24, %cst_11 [1, 2, 3, 4] : vector<1x1x1x49x512xf32> to vector<1xf32>
    %26 = vector.shape_cast %25 : vector<1xf32> to vector<1x1x1x1x1xf32>
    %27 = vector.extract %26[0, 0, 0, 0, 0] : f32 from vector<1x1x1x1x1xf32>
    %28 = arith.mulf %23, %6 : vector<1x1x49x512xf32>
    %29 = vector.shape_cast %28 : vector<1x1x49x512xf32> to vector<1x1x1x49x512xf32>
    %cst_12 = arith.constant dense<0.000000e+00> : vector<1xf32>
    %30 = vector.multi_reduction <add>, %29, %cst_12 [1, 2, 3, 4] : vector<1x1x1x49x512xf32> to vector<1xf32>
    %31 = vector.shape_cast %30 : vector<1xf32> to vector<1x1x1x1x1xf32>
    %32 = vector.extract %31[0, 0, 0, 0, 0] : f32 from vector<1x1x1x1x1xf32>
    %33 = arith.addf %23, %6 : vector<1x1x49x512xf32>
    %34 = vector.shape_cast %33 : vector<1x1x49x512xf32> to vector<1x1x1x49x512xf32>
    %cst_13 = arith.constant dense<0.000000e+00> : vector<1xf32>
    %35 = vector.multi_reduction <add>, %34, %cst_13 [1, 2, 3, 4] : vector<1x1x1x49x512xf32> to vector<1xf32>
    %36 = vector.shape_cast %35 : vector<1xf32> to vector<1x1x1x1x1xf32>
    %37 = vector.extract %36[0, 0, 0, 0, 0] : f32 from vector<1x1x1x1x1xf32>
    %38 = tpu.iota {dimensions = array<i32: 3>} : vector<1x1x8x128xi32>
    %c0_14 = arith.constant 0 : index
    %c0_15 = arith.constant 0 : index
    %c0_16 = arith.constant 0 : index
    %c0_17 = arith.constant 0 : index
    %39 = vector.load %arg5[%c0_14, %c0_15, %c0_16, %c0_17] : memref<1x1x8x128xf32, #tpu.memory_space<vmem>>, vector<1x1x8x128xf32>
    %c0_i32_18 = arith.constant 0 : i32
    %40 = vector.broadcast %c0_i32_18 : i32 to vector<1x1x8x128xi32>
    %41 = arith.cmpi eq, %38, %40 : vector<1x1x8x128xi32>
    %cst_19 = arith.constant 0.000000e+00 : f32
    %42 = vector.broadcast %27 : f32 to vector<1x1x8x128xf32>
    %43 = vector.broadcast %cst_19 : f32 to vector<1x1x8x128xf32>
    %44 = arith.select %41, %42, %43 : vector<1x1x8x128xi1>, vector<1x1x8x128xf32>
    %c1_i32 = arith.constant 1 : i32
    %45 = vector.broadcast %c1_i32 : i32 to vector<1x1x8x128xi32>
    %46 = arith.cmpi eq, %38, %45 : vector<1x1x8x128xi32>
    %cst_20 = arith.constant 0.000000e+00 : f32
    %47 = vector.broadcast %32 : f32 to vector<1x1x8x128xf32>
    %48 = vector.broadcast %cst_20 : f32 to vector<1x1x8x128xf32>
    %49 = arith.select %46, %47, %48 : vector<1x1x8x128xi1>, vector<1x1x8x128xf32>
    %50 = arith.addf %44, %49 : vector<1x1x8x128xf32>
    %c2_i32 = arith.constant 2 : i32
    %51 = vector.broadcast %c2_i32 : i32 to vector<1x1x8x128xi32>
    %52 = arith.cmpi eq, %38, %51 : vector<1x1x8x128xi32>
    %cst_21 = arith.constant 0.000000e+00 : f32
    %53 = vector.broadcast %37 : f32 to vector<1x1x8x128xf32>
    %54 = vector.broadcast %cst_21 : f32 to vector<1x1x8x128xf32>
    %55 = arith.select %52, %53, %54 : vector<1x1x8x128xi1>, vector<1x1x8x128xf32>
    %56 = arith.addf %50, %55 : vector<1x1x8x128xf32>
    %57 = arith.addf %39, %56 : vector<1x1x8x128xf32>
    %c0_22 = arith.constant 0 : index
    %c0_23 = arith.constant 0 : index
    %c0_24 = arith.constant 0 : index
    %c0_25 = arith.constant 0 : index
    %58 = vector.load %arg5[%c0_22, %c0_23, %c0_24, %c0_25] : memref<1x1x8x128xf32, #tpu.memory_space<vmem>>, vector<1x1x8x128xf32>
    tpu.vector_store %arg5[%c0_22, %c0_23, %c0_24, %c0_25], %57 {strides = array<i32>} : memref<1x1x8x128xf32, #tpu.memory_space<vmem>>, vector<1x1x8x128xf32>,
    return
  }
  func.func @transform_0(%arg0: i32, %arg1: i32, %arg2: i32) -> (i32, i32, i32, i32) {
    %c0_i32 = arith.constant 0 : i32
    %c0_i32_0 = arith.constant 0 : i32
    return %arg1, %arg0, %arg2, %c0_i32 : i32, i32, i32, i32
  }
  func.func @transform_1(%arg0: i32, %arg1: i32, %arg2: i32) -> (i32, i32, i32, i32) {
    %c0_i32 = arith.constant 0 : i32
    %c0_i32_0 = arith.constant 0 : i32
    return %arg1, %arg0, %arg2, %c0_i32 : i32, i32, i32, i32
  }
  func.func @transform_2(%arg0: i32, %arg1: i32, %arg2: i32) -> (i32, i32, i32, i32) {
    %c0_i32 = arith.constant 0 : i32
    %c0_i32_0 = arith.constant 0 : i32
    %c0_i32_1 = arith.constant 0 : i32
    return %arg0, %arg1, %c0_i32, %c0_i32_0 : i32, i32, i32, i32
  }
}

</mosaic_0001>

<llo_original>
// kernel: tpu_custom_call.1
$region0: #{tpu_custom_call.1}
  #allocation0 [shape = 'u32[]', space=smem, size = 0x4, offset = 0x4, fixed_abs, tag = 'smem constant byte address 0x4 - core index']
  #allocation1 [shape = 'u32[72,128]{1,0:T(1,128)}', space=vmem, size = 0x9000, scoped, tag = 'internal scratch']
  %s0 = inlined_call_operand.vmem [shape: bf16[2,2,49,512], index: 0, kind: input, shape index: {}]
  %s1 = inlined_call_operand.vmem [shape: bf16[2,2,49,512], index: 1, kind: input, shape index: {}]
  %s2 = inlined_call_operand.hbm [shape: f32[2,2,8,128], index: 2, kind: output, shape index: {}]
  %s3 = sld [smem:[#allocation0]]
  $region45: #{tpu_custom_call.1} parent=0
    _
  %s5 = ssub.s32 1, %s3
  %s6 = scalar_select 0, %s5, %s3
  $region1: #{tpu_custom_call.1} parent=0
    #allocation2 [shape = 'u8[8192]{0}', space=vmem, size = 0x2000, scoped, tag = 'output window, operand 0']
    #allocation3 [shape = 's32[2]{0}', space=sflag, size = 0x8, scoped, tag = 'scoped memory for tpu_custom_call.1']
    %7 = vsyncpa [#allocation3], 0
    %s8 = scalar_lea.sflag [#allocation3], 1
    %9 = vsyncpa %s8, 0
    loop: start=0, step=1, limit=6
    $region2: #{tpu_custom_call.1} parent=1 // loop_pre_header
      _
    $region3: #{tpu_custom_call.1} parent=1 // loop_header
      %s11 = sphi 0, %s15
      %p12 = scmp.ge.s32.totalorder %s11, 6
      %s18 = sphi 0, %s37
      %s19 = sphi 0, %s33
      %s20 = sphi 0, %s29
      %s21 = sphi 0, %s18
      %s22 = sphi 0, %s19
      %s23 = sphi 0, %s20
      %s24 = sphi 0, %s21
      %s25 = sphi 0, %s22
      %s26 = sphi 0, %s23
      %s44 = sphi 0, %s46
      %s47 = sphi 0, %s44
      %s48 = sphi 0, %s47
      %s64 = sphi 0, %s48
      %s74 = sphi 0, %s76
      %s77 = sphi 0, %s74
      %s78 = sphi 0, %s77
      %s94 = sphi 0, %s78
      %s102 = sphi 0, %s104
      %s105 = sphi 0, %s102
      %s106 = sphi 0, %s105
      %s122 = sphi 0, %s106
    $region4: #{tpu_custom_call.1} parent=1 // loop_header_branch
      %14 = sbr.rel (%p12) target = $region8
    $region5: #{tpu_custom_call.1} parent=1 // loop_body
      %s16 = ssub.s32 %s11, 1
      %s17 = ssub.s32 %s11, 2
      %s27 = sadd.s32 1, %s20
      %p28 = scmp.ge.s32.totalorder %s27, 1
      %s29 = scalar_select %p28, 0, %s27
      %s30 = sadd.s32 1, %s19
      %s31 = scalar_select %p28, %s30, %s19
      %p32 = scmp.ge.s32.totalorder %s31, 2
      %s33 = scalar_select %p32, 0, %s31
      %s34 = sadd.s32 1, %s18
      %s35 = scalar_select %p32, %s34, %s18
      %p36 = scmp.ge.s32.totalorder %s35, 2
      %s37 = scalar_select %p36, 0, %s35
      %s38 = ssub.s32 %s19, %s33
      %s39 = ssub.s32 %s18, %s37
      %s40 = sor.u32 %s38, %s39
      %s41 = ssub.s32 %s20, %s29
      %s42 = sor.u32 %s40, %s41
      %p43 = scmp.eq.s32.totalorder %s42, 0
      %s45 = sadd.s32 %s44, 1
      %s46 = scalar_select %p43, %s44, %s45
      %p49 = pneg %p43
      %p50 = scmp.eq.s32.totalorder %s11, 3
      %p51 = por %p49, %p50
      %p52 = scmp.ne.s32.totalorder %s44, %s47
      %p53 = scmp.eq.s32.totalorder %s11, 0
      %p54 = por %p52, %p53
      %p55 = scmp.ne.s32.totalorder %s44, %s47
      %p56 = scmp.eq.s32.totalorder %s16, 3
      %p57 = por %p55, %p56
      %p58 = scmp.ne.s32.totalorder %s47, %s48
      %p59 = scmp.eq.s32.totalorder %s16, 0
      %p60 = por %p58, %p59
      %p61 = scmp.ne.s32.totalorder %s47, %s48
      %p62 = scmp.eq.s32.totalorder %s17, 3
      %p63 = por %p61, %p62
      %p65 = scmp.ne.s32.totalorder %s48, %s64
      %p66 = scmp.eq.s32.totalorder %s17, 0
      %p67 = por %p65, %p66
      %s68 = ssub.s32 %s19, %s33
      %s69 = ssub.s32 %s18, %s37
      %s70 = sor.u32 %s68, %s69
      %s71 = ssub.s32 %s20, %s29
      %s72 = sor.u32 %s70, %s71
      %p73 = scmp.eq.s32.totalorder %s72, 0
      %s75 = sadd.s32 %s74, 1
      %s76 = scalar_select %p73, %s74, %s75
      %p79 = pneg %p73
      %p80 = scmp.eq.s32.totalorder %s11, 3
      %p81 = por %p79, %p80
      %p82 = scmp.ne.s32.totalorder %s74, %s77
      %p83 = scmp.eq.s32.totalorder %s11, 0
      %p84 = por %p82, %p83
      %p85 = scmp.ne.s32.totalorder %s74, %s77
      %p86 = scmp.eq.s32.totalorder %s16, 3
      %p87 = por %p85, %p86
      %p88 = scmp.ne.s32.totalorder %s77, %s78
      %p89 = scmp.eq.s32.totalorder %s16, 0
      %p90 = por %p88, %p89
      %p91 = scmp.ne.s32.totalorder %s77, %s78
      %p92 = scmp.eq.s32.totalorder %s17, 3
      %p93 = por %p91, %p92
      %p95 = scmp.ne.s32.totalorder %s78, %s94
      %p96 = scmp.eq.s32.totalorder %s17, 0
      %p97 = por %p95, %p96
      %s98 = ssub.s32 %s18, %s37
      %s99 = ssub.s32 %s19, %s33
      %s100 = sor.u32 %s98, %s99
      %p101 = scmp.eq.s32.totalorder %s100, 0
      %s103 = sadd.s32 %s102, 1
      %s104 = scalar_select %p101, %s102, %s103
      %p107 = pneg %p101
      %p108 = scmp.eq.s32.totalorder %s11, 3
      %p109 = por %p107, %p108
      %p110 = scmp.ne.s32.totalorder %s102, %s105
      %p111 = scmp.eq.s32.totalorder %s11, 0
      %p112 = por %p110, %p111
      %p113 = scmp.ne.s32.totalorder %s102, %s105
      %p114 = scmp.eq.s32.totalorder %s16, 3
      %p115 = por %p113, %p114
      %p116 = scmp.ne.s32.totalorder %s105, %s106
      %p117 = scmp.eq.s32.totalorder %s16, 0
      %p118 = por %p116, %p117
      %p119 = scmp.ne.s32.totalorder %s105, %s106
      %p120 = scmp.eq.s32.totalorder %s17, 3
      %p121 = por %p119, %p120
      %p123 = scmp.ne.s32.totalorder %s106, %s122
      %p124 = scmp.eq.s32.totalorder %s17, 0
      %p125 = por %p123, %p124
      %p126 = scmp.le.s32.totalorder 1, %s11
      %p127 = scmp.lt.s32.totalorder %s11, 5
      %p128 = pnand %p126, %p127
      %p129 = pneg %p128
      // Predicated region
      $region9: #{tpu_custom_call.1} parent=5 // pred_check
        _
      $region10: #{tpu_custom_call.1} parent=5 // pred_check_branch
        %131 = sbr.rel (%p128) target = $region12
      $region11: #{tpu_custom_call.1} parent=5 // pred_region
        %s132 = ssub.s32 %s11, 1
      $region12: #{tpu_custom_call.1} parent=5 // pred_fallthru
        _
      %p133 = scmp.lt.s32.totalorder %s11, 4
      // Predicated region
      $region13: #{tpu_custom_call.1} parent=5 // pred_check
        %p134 = pneg %p133
      $region14: #{tpu_custom_call.1} parent=5 // pred_check_branch
        %136 = sbr.rel (%p134) target = $region16
      $region15: #{tpu_custom_call.1} parent=5 // pred_region
        // Predicated region
        $region17: #{tpu_custom_call.1} parent=15 // pred_check
          %p137 = pneg %p54
        $region18: #{tpu_custom_call.1} parent=15 // pred_check_branch
          %139 = sbr.rel (%p137) target = $region20
        $region19: #{tpu_custom_call.1} parent=15 // pred_region
          %s140 = smul.u32 7, %s20
          %p141 = scmp.lt.s32.totalorder %s19, 1
          %s142 = scalar_select %p141, %s19, 1
          %p143 = scmp.lt.s32.totalorder %s18, 1
          %s144 = scalar_select %p143, %s18, 1
          %p145 = scmp.lt.s32.totalorder %s140, 6
          %s146 = scalar_select %p145, %s140, 6
          %s147 = smul.addr %s146, 4
          %s148 = smul.addr %s144, 28
          %s149 = sadd.s32 %s147, %s148
          %s150 = smul.addr %s142, 56
          %s151 = sadd.s32 %s149, %s150
          %s152 = smul.addr %s151, 4
          %s153 = scalar_lea.vmem %s0, %s152
          %s154 = smul.u32 7, %s20
        $region20: #{tpu_custom_call.1} parent=15 // pred_fallthru
          _
        // Predicated region
        $region21: #{tpu_custom_call.1} parent=15 // pred_check
          %p155 = pneg %p84
        $region22: #{tpu_custom_call.1} parent=15 // pred_check_branch
          %157 = sbr.rel (%p155) target = $region24
        $region23: #{tpu_custom_call.1} parent=15 // pred_region
          %s158 = smul.u32 7, %s20
          %p159 = scmp.lt.s32.totalorder %s19, 1
          %s160 = scalar_select %p159, %s19, 1
          %p161 = scmp.lt.s32.totalorder %s18, 1
          %s162 = scalar_select %p161, %s18, 1
          %p163 = scmp.lt.s32.totalorder %s158, 6
          %s164 = scalar_select %p163, %s158, 6
          %s165 = smul.addr %s164, 4
          %s166 = smul.addr %s162, 28
          %s167 = sadd.s32 %s165, %s166
          %s168 = smul.addr %s160, 56
          %s169 = sadd.s32 %s167, %s168
          %s170 = smul.addr %s169, 4
          %s171 = scalar_lea.vmem %s1, %s170
          %s172 = smul.u32 7, %s20
        $region24: #{tpu_custom_call.1} parent=15 // pred_fallthru
          _
      $region16: #{tpu_custom_call.1} parent=5 // pred_fallthru
        _
      %p173 = scmp.le.s32.totalorder 1, %s11
      %p174 = scmp.lt.s32.totalorder %s11, 5
      %p175 = pnand %p173, %p174
      %p176 = pneg %p175
      // Predicated region
      $region25: #{tpu_custom_call.1} parent=5 // pred_check
        _
      $region26: #{tpu_custom_call.1} parent=5 // pred_check_branch
        %178 = sbr.rel (%p175) target = $region28
      $region27: #{tpu_custom_call.1} parent=5 // pred_region
        %s179 = ssub.s32 %s11, 1
        %s180 = smul.u32 7, %s23
        %p181 = scmp.lt.s32.totalorder %s22, 1
        %s182 = scalar_select %p181, %s22, 1
        %p183 = scmp.lt.s32.totalorder %s21, 1
        %s184 = scalar_select %p183, %s21, 1
        %p185 = scmp.lt.s32.totalorder %s180, 6
        %s186 = scalar_select %p185, %s180, 6
        %s187 = smul.addr %s186, 4
        %s188 = smul.addr %s184, 28
        %s189 = sadd.s32 %s187, %s188
        %s190 = smul.addr %s182, 56
        %s191 = sadd.s32 %s189, %s190
        %s192 = smul.addr %s191, 4
        %s193 = scalar_lea.vmem %s0, %s192
        %p194 = pneg %p60
        %p195 = pneg %p57
        %s196 = smul.u32 7, %s23
        %p197 = scmp.lt.s32.totalorder %s22, 1
        %s198 = scalar_select %p197, %s22, 1
        %p199 = scmp.lt.s32.totalorder %s21, 1
        %s200 = scalar_select %p199, %s21, 1
        %p201 = scmp.lt.s32.totalorder %s196, 6
        %s202 = scalar_select %p201, %s196, 6
        %s203 = smul.addr %s202, 4
        %s204 = smul.addr %s200, 28
        %s205 = sadd.s32 %s203, %s204
        %s206 = smul.addr %s198, 56
        %s207 = sadd.s32 %s205, %s206
        %s208 = smul.addr %s207, 4
        %s209 = scalar_lea.vmem %s1, %s208
        %p210 = pneg %p90
        %p211 = pneg %p87
        %p212 = pneg %p118
        %p213 = pneg %p115
        %s214 = sand.u32 %s105, 1
        %s215 = scalar_lea.sflag [#allocation3], %s214
        %s216 = sand.u32 %s105, 1
        %s217 = smul.addr %s216, 8
        %s218 = scalar_lea.vmem [#allocation2], %s217
        %s219 = smul.u32 7, %s23
        %p220 = scmp.lt.s32.totalorder %s22, 1
        %s221 = scalar_select %p220, %s22, 1
        %p222 = scmp.lt.s32.totalorder %s21, 1
        %s223 = scalar_select %p222, %s21, 1
        %p224 = scmp.lt.s32.totalorder %s219, 6
        %s225 = scalar_select %p224, %s219, 6
        %s226 = smul.addr %s225, 4
        %s227 = smul.addr %s223, 28
        %s228 = sadd.s32 %s226, %s227
        %s229 = smul.addr %s221, 56
        %s230 = sadd.s32 %s228, %s229
        %s231 = smul.addr %s230, 4
        %s232 = scalar_lea.vmem %s0, %s231
        %s233 = smul.u32 7, %s23
        %s234 = smul.u32 7, %s23
        %p235 = scmp.lt.s32.totalorder %s22, 1
        %s236 = scalar_select %p235, %s22, 1
        %p237 = scmp.lt.s32.totalorder %s21, 1
        %s238 = scalar_select %p237, %s21, 1
        %p239 = scmp.lt.s32.totalorder %s234, 6
        %s240 = scalar_select %p239, %s234, 6
        %s241 = smul.addr %s240, 4
        %s242 = smul.addr %s238, 28
        %s243 = sadd.s32 %s241, %s242
        %s244 = smul.addr %s236, 56
        %s245 = sadd.s32 %s243, %s244
        %s246 = smul.addr %s245, 4
        %s247 = scalar_lea.vmem %s1, %s246
        %s248 = smul.u32 7, %s23
        %p249 = scmp.eq.s32.totalorder %s23, 0
        // Predicated region
        $region29: #{tpu_custom_call.1} parent=27 // pred_check
          %p250 = pneg %p249
        $region30: #{tpu_custom_call.1} parent=27 // pred_check_branch
          %252 = sbr.rel (%p250) target = $region32
        $region31: #{tpu_custom_call.1} parent=27 // pred_region
          %253 = vst [vmem:[%s218] sm:$0xff] 0.0
        $region32: #{tpu_custom_call.1} parent=27 // pred_fallthru
          _
        %v254 = vld [vmem:[%s232] sm:$0xff]
        %v255 = vld [vmem:[%s232 + $0x8] sm:$0xff]
        %v256 = vld [vmem:[%s232 + $0x10] sm:$0xff]
        %v257 = vld [vmem:[%s232 + $0x18] sm:$0xff]
        %v258 = vld [vmem:[%s232 + $0x20] sm:$0xff]
        %v259 = vld [vmem:[%s232 + $0x28] sm:$0xff]
        %v260 = vld [vmem:[%s232 + $0x30] sm:$0xff]
        %v261 = vld [vmem:[%s232 + $0x38] sm:$0xff]
        %v262 = vld [vmem:[%s232 + $0x40] sm:$0xff]
        %v263 = vld [vmem:[%s232 + $0x48] sm:$0xff]
        %v264 = vld [vmem:[%s232 + $0x50] sm:$0xff]
        %v265 = vld [vmem:[%s232 + $0x58] sm:$0xff]
        %v266 = vld [vmem:[%s232 + $0x60] sm:$0x11]
        %v267 = vld [vmem:[%s232 + $0x68] sm:$0x11]
        %v268 = vunpack.c.l.bf16 %v254
        %v269 = vunpack.c.h.bf16 %v254
        %v270 = vunpack.c.l.bf16 %v255
        %v271 = vunpack.c.h.bf16 %v255
        %v272 = vunpack.c.l.bf16 %v256
        %v273 = vunpack.c.h.bf16 %v256
        %v274 = vunpack.c.l.bf16 %v257
        %v275 = vunpack.c.h.bf16 %v257
        %v276 = vunpack.c.l.bf16 %v258
        %v277 = vunpack.c.h.bf16 %v258
        %v278 = vunpack.c.l.bf16 %v259
        %v279 = vunpack.c.h.bf16 %v259
        %v280 = vunpack.c.l.bf16 %v260
        %v281 = vunpack.c.h.bf16 %v260
        %v282 = vunpack.c.l.bf16 %v261
        %v283 = vunpack.c.h.bf16 %v261
        %v284 = vunpack.c.l.bf16 %v262
        %v285 = vunpack.c.h.bf16 %v262
        %v286 = vunpack.c.l.bf16 %v263
        %v287 = vunpack.c.h.bf16 %v263
        %v288 = vunpack.c.l.bf16 %v264
        %v289 = vunpack.c.h.bf16 %v264
        %v290 = vunpack.c.l.bf16 %v265
        %v291 = vunpack.c.h.bf16 %v265
        %v292 = vunpack.c.l.bf16 %v266
        %v293 = vunpack.c.h.bf16 %v266
        %v294 = vunpack.c.l.bf16 %v267
        %v295 = vunpack.c.h.bf16 %v267
        %v296 = vld [vmem:[%s247] sm:$0xff]
        %v297 = vld [vmem:[%s247 + $0x8] sm:$0xff]
        %v298 = vld [vmem:[%s247 + $0x10] sm:$0xff]
        %v299 = vld [vmem:[%s247 + $0x18] sm:$0xff]
        %v300 = vld [vmem:[%s247 + $0x20] sm:$0xff]
        %v301 = vld [vmem:[%s247 + $0x28] sm:$0xff]
        %v302 = vld [vmem:[%s247 + $0x30] sm:$0xff]
        %v303 = vld [vmem:[%s247 + $0x38] sm:$0xff]
        %v304 = vld [vmem:[%s247 + $0x40] sm:$0xff]
        %v305 = vld [vmem:[%s247 + $0x48] sm:$0xff]
        %v306 = vld [vmem:[%s247 + $0x50] sm:$0xff]
        %v307 = vld [vmem:[%s247 + $0x58] sm:$0xff]
        %v308 = vld [vmem:[%s247 + $0x60] sm:$0x11]
        %v309 = vld [vmem:[%s247 + $0x68] sm:$0x11]
        %v310 = vunpack.c.l.bf16 %v296
        %v311 = vunpack.c.h.bf16 %v296
        %v312 = vunpack.c.l.bf16 %v297
        %v313 = vunpack.c.h.bf16 %v297
        %v314 = vunpack.c.l.bf16 %v298
        %v315 = vunpack.c.h.bf16 %v298
        %v316 = vunpack.c.l.bf16 %v299
        %v317 = vunpack.c.h.bf16 %v299
        %v318 = vunpack.c.l.bf16 %v300
        %v319 = vunpack.c.h.bf16 %v300
        %v320 = vunpack.c.l.bf16 %v301
        %v321 = vunpack.c.h.bf16 %v301
        %v322 = vunpack.c.l.bf16 %v302
        %v323 = vunpack.c.h.bf16 %v302
        %v324 = vunpack.c.l.bf16 %v303
        %v325 = vunpack.c.h.bf16 %v303
        %v326 = vunpack.c.l.bf16 %v304
        %v327 = vunpack.c.h.bf16 %v304
        %v328 = vunpack.c.l.bf16 %v305
        %v329 = vunpack.c.h.bf16 %v305
        %v330 = vunpack.c.l.bf16 %v306
        %v331 = vunpack.c.h.bf16 %v306
        %v332 = vunpack.c.l.bf16 %v307
        %v333 = vunpack.c.h.bf16 %v307
        %v334 = vunpack.c.l.bf16 %v308
        %v335 = vunpack.c.h.bf16 %v308
        %v336 = vunpack.c.l.bf16 %v309
        %v337 = vunpack.c.h.bf16 %v309
        %v338 = vand.u32 2147483647, %v268
        %v339 = vand.u32 2147483647, %v269
        %v340 = vand.u32 2147483647, %v270
        %v341 = vand.u32 2147483647, %v271
        %v342 = vand.u32 2147483647, %v272
        %v343 = vand.u32 2147483647, %v273
        %v344 = vand.u32 2147483647, %v274
        %v345 = vand.u32 2147483647, %v275
        %v346 = vand.u32 2147483647, %v276
        %v347 = vand.u32 2147483647, %v277
        %v348 = vand.u32 2147483647, %v278
        %v349 = vand.u32 2147483647, %v279
        %v350 = vand.u32 2147483647, %v280
        %v351 = vand.u32 2147483647, %v281
        %v352 = vand.u32 2147483647, %v282
        %v353 = vand.u32 2147483647, %v283
        %v354 = vand.u32 2147483647, %v284
        %v355 = vand.u32 2147483647, %v285
        %v356 = vand.u32 2147483647, %v286
        %v357 = vand.u32 2147483647, %v287
        %v358 = vand.u32 2147483647, %v288
        %v359 = vand.u32 2147483647, %v289
        %v360 = vand.u32 2147483647, %v290
        %v361 = vand.u32 2147483647, %v291
        %v362 = vand.u32 2147483647, %v292
        %v363 = vand.u32 2147483647, %v293
        %v364 = vand.u32 2147483647, %v294
        %v365 = vand.u32 2147483647, %v295
        %v366 = vsub.f32 0.0, %v338
        %v367 = vsub.f32 0.0, %v339
        %v368 = vsub.f32 0.0, %v340
        %v369 = vsub.f32 0.0, %v341
        %v370 = vsub.f32 0.0, %v342
        %v371 = vsub.f32 0.0, %v343
        %v372 = vsub.f32 0.0, %v344
        %v373 = vsub.f32 0.0, %v345
        %v374 = vsub.f32 0.0, %v346
        %v375 = vsub.f32 0.0, %v347
        %v376 = vsub.f32 0.0, %v348
        %v377 = vsub.f32 0.0, %v349
        %v378 = vsub.f32 0.0, %v350
        %v379 = vsub.f32 0.0, %v351
        %v380 = vsub.f32 0.0, %v352
        %v381 = vsub.f32 0.0, %v353
        %v382 = vsub.f32 0.0, %v354
        %v383 = vsub.f32 0.0, %v355
        %v384 = vsub.f32 0.0, %v356
        %v385 = vsub.f32 0.0, %v357
        %v386 = vsub.f32 0.0, %v358
        %v387 = vsub.f32 0.0, %v359
        %v388 = vsub.f32 0.0, %v360
        %v389 = vsub.f32 0.0, %v361
        %v390 = vsub.f32 0.0, %v362
        %v391 = vsub.f32 0.0, %v363
        %v392 = vsub.f32 0.0, %v364
        %v393 = vsub.f32 0.0, %v365
        %v394 = vmul.f32 %v366, 1.442695
        %v395 = vpow.pop %v394
        %v396 = vmul.f32 %v367, 1.442695
        %v397 = vpow.pop %v396
        %v398 = vmul.f32 %v368, 1.442695
        %v399 = vpow.pop %v398
        %v400 = vmul.f32 %v369, 1.442695
        %v401 = vpow.pop %v400
        %v402 = vmul.f32 %v370, 1.442695
        %v403 = vpow.pop %v402
        %v404 = vmul.f32 %v371, 1.442695
        %v405 = vpow.pop %v404
        %v406 = vmul.f32 %v372, 1.442695
        %v407 = vpow.pop %v406
        %v408 = vmul.f32 %v373, 1.442695
        %v409 = vpow.pop %v408
        %v410 = vmul.f32 %v374, 1.442695
        %v411 = vpow.pop %v410
        %v412 = vmul.f32 %v375, 1.442695
        %v413 = vpow.pop %v412
        %v414 = vmul.f32 %v376, 1.442695
        %v415 = vpow.pop %v414
        %v416 = vmul.f32 %v377, 1.442695
        %v417 = vpow.pop %v416
        %v418 = vmul.f32 %v378, 1.442695
        %v419 = vpow.pop %v418
        %v420 = vmul.f32 %v379, 1.442695
        %v421 = vpow.pop %v420
        %v422 = vmul.f32 %v380, 1.442695
        %v423 = vpow.pop %v422
        %v424 = vmul.f32 %v381, 1.442695
        %v425 = vpow.pop %v424
        %v426 = vmul.f32 %v382, 1.442695
        %v427 = vpow.pop %v426
        %v428 = vmul.f32 %v383, 1.442695
        %v429 = vpow.pop %v428
        %v430 = vmul.f32 %v384, 1.442695
        %v431 = vpow.pop %v430
        %v432 = vmul.f32 %v385, 1.442695
        %v433 = vpow.pop %v432
        %v434 = vmul.f32 %v386, 1.442695
        %v435 = vpow.pop %v434
        %v436 = vmul.f32 %v387, 1.442695
        %v437 = vpow.pop %v436
        %v438 = vmul.f32 %v388, 1.442695
        %v439 = vpow.pop %v438
        %v440 = vmul.f32 %v389, 1.442695
        %v441 = vpow.pop %v440
        %v442 = vmul.f32 %v390, 1.442695
        %v443 = vpow.pop %v442
        %v444 = vmul.f32 %v391, 1.442695
        %v445 = vpow.pop %v444
        %v446 = vmul.f32 %v392, 1.442695
        %v447 = vpow.pop %v446
        %v448 = vmul.f32 %v393, 1.442695
        %v449 = vpow.pop %v448
        %v450 = vmax.f32 %v268, 0.0
        %v451 = vmax.f32 %v269, 0.0
        %v452 = vmax.f32 %v270, 0.0
        %v453 = vmax.f32 %v271, 0.0
        %v454 = vmax.f32 %v272, 0.0
        %v455 = vmax.f32 %v273, 0.0
        %v456 = vmax.f32 %v274, 0.0
        %v457 = vmax.f32 %v275, 0.0
        %v458 = vmax.f32 %v276, 0.0
        %v459 = vmax.f32 %v277, 0.0
        %v460 = vmax.f32 %v278, 0.0
        %v461 = vmax.f32 %v279, 0.0
        %v462 = vmax.f32 %v280, 0.0
        %v463 = vmax.f32 %v281, 0.0
        %v464 = vmax.f32 %v282, 0.0
        %v465 = vmax.f32 %v283, 0.0
        %v466 = vmax.f32 %v284, 0.0
        %v467 = vmax.f32 %v285, 0.0
        %v468 = vmax.f32 %v286, 0.0
        %v469 = vmax.f32 %v287, 0.0
        %v470 = vmax.f32 %v288, 0.0
        %v471 = vmax.f32 %v289, 0.0
        %v472 = vmax.f32 %v290, 0.0
        %v473 = vmax.f32 %v291, 0.0
        %v474 = vmax.f32 %v292, 0.0
        %v475 = vmax.f32 %v293, 0.0
        %v476 = vmax.f32 %v294, 0.0
        %v477 = vmax.f32 %v295, 0.0
        %v478 = vmul.f32 %v268, %v310
        %v479 = vmul.f32 %v269, %v311
        %v480 = vmul.f32 %v270, %v312
        %v481 = vmul.f32 %v271, %v313
        %v482 = vmul.f32 %v272, %v314
        %v483 = vmul.f32 %v273, %v315
        %v484 = vmul.f32 %v274, %v316
        %v485 = vmul.f32 %v275, %v317
        %v486 = vmul.f32 %v276, %v318
        %v487 = vmul.f32 %v277, %v319
        %v488 = vmul.f32 %v278, %v320
        %v489 = vmul.f32 %v279, %v321
        %v490 = vmul.f32 %v280, %v322
        %v491 = vmul.f32 %v281, %v323
        %v492 = vmul.f32 %v282, %v324
        %v493 = vmul.f32 %v283, %v325
        %v494 = vmul.f32 %v284, %v326
        %v495 = vmul.f32 %v285, %v327
        %v496 = vmul.f32 %v286, %v328
        %v497 = vmul.f32 %v287, %v329
        %v498 = vmul.f32 %v288, %v330
        %v499 = vmul.f32 %v289, %v331
        %v500 = vmul.f32 %v290, %v332
        %v501 = vmul.f32 %v291, %v333
        %v502 = vmul.f32 %v292, %v334
        %v503 = vmul.f32 %v293, %v335
        %v504 = vmul.f32 %v294, %v336
        %v505 = vmul.f32 %v295, %v337
        %v506 = vsub.f32 %v450, %v478
        %v507 = vsub.f32 %v451, %v479
        %v508 = vsub.f32 %v452, %v480
        %v509 = vsub.f32 %v453, %v481
        %v510 = vsub.f32 %v454, %v482
        %v511 = vsub.f32 %v455, %v483
        %v512 = vsub.f32 %v456, %v484
        %v513 = vsub.f32 %v457, %v485
        %v514 = vsub.f32 %v458, %v486
        %v515 = vsub.f32 %v459, %v487
        %v516 = vsub.f32 %v460, %v488
        %v517 = vsub.f32 %v461, %v489
        %v518 = vsub.f32 %v462, %v490
        %v519 = vsub.f32 %v463, %v491
        %v520 = vsub.f32 %v464, %v492
        %v521 = vsub.f32 %v465, %v493
        %v522 = vsub.f32 %v466, %v494
        %v523 = vsub.f32 %v467, %v495
        %v524 = vsub.f32 %v468, %v496
        %v525 = vsub.f32 %v469, %v497
        %v526 = vsub.f32 %v470, %v498
        %v527 = vsub.f32 %v471, %v499
        %v528 = vsub.f32 %v472, %v500
        %v529 = vsub.f32 %v473, %v501
        %v530 = vsub.f32 %v474, %v502
        %v531 = vsub.f32 %v475, %v503
        %v532 = vsub.f32 %v476, %v504
        %v533 = vsub.f32 %v477, %v505
        %v534 = vadd.f32 %v395, 1.0
        %v535 = vlog2.pop %v534
        %v536 = vmul.f32 %v535, 0.6931472
        %v537 = vmul.f32 -0.5, %v395
        %v538 = vadd.f32 %v537, 1.0
        %v539 = vmul.f32 %v538, %v395
        %v540 = vand.u32 2147483647, %v395
        %vm541 = vcmp.lt.f32.partialorder %v540, 0.0004427343
        %v542 = vsel %vm541, %v539, %v536
        %v543 = vadd.f32 %v397, 1.0
        %v544 = vlog2.pop %v543
        %v545 = vmul.f32 %v544, 0.6931472
        %v546 = vmul.f32 -0.5, %v397
        %v547 = vadd.f32 %v546, 1.0
        %v548 = vmul.f32 %v547, %v397
        %v549 = vand.u32 2147483647, %v397
        %vm550 = vcmp.lt.f32.partialorder %v549, 0.0004427343
        %v551 = vsel %vm550, %v548, %v545
        %v552 = vadd.f32 %v399, 1.0
        %v553 = vlog2.pop %v552
        %v554 = vmul.f32 %v553, 0.6931472
        %v555 = vmul.f32 -0.5, %v399
        %v556 = vadd.f32 %v555, 1.0
        %v557 = vmul.f32 %v556, %v399
        %v558 = vand.u32 2147483647, %v399
        %vm559 = vcmp.lt.f32.partialorder %v558, 0.0004427343
        %v560 = vsel %vm559, %v557, %v554
        %v561 = vadd.f32 %v401, 1.0
        %v562 = vlog2.pop %v561
        %v563 = vmul.f32 %v562, 0.6931472
        %v564 = vmul.f32 -0.5, %v401
        %v565 = vadd.f32 %v564, 1.0
        %v566 = vmul.f32 %v565, %v401
        %v567 = vand.u32 2147483647, %v401
        %vm568 = vcmp.lt.f32.partialorder %v567, 0.0004427343
        %v569 = vsel %vm568, %v566, %v563
        %v570 = vadd.f32 %v403, 1.0
        %v571 = vlog2.pop %v570
        %v572 = vmul.f32 %v571, 0.6931472
        %v573 = vmul.f32 -0.5, %v403
        %v574 = vadd.f32 %v573, 1.0
        %v575 = vmul.f32 %v574, %v403
        %v576 = vand.u32 2147483647, %v403
        %vm577 = vcmp.lt.f32.partialorder %v576, 0.0004427343
        %v578 = vsel %vm577, %v575, %v572
        %v579 = vadd.f32 %v405, 1.0
        %v580 = vlog2.pop %v579
        %v581 = vmul.f32 %v580, 0.6931472
        %v582 = vmul.f32 -0.5, %v405
        %v583 = vadd.f32 %v582, 1.0
        %v584 = vmul.f32 %v583, %v405
        %v585 = vand.u32 2147483647, %v405
        %vm586 = vcmp.lt.f32.partialorder %v585, 0.0004427343
        %v587 = vsel %vm586, %v584, %v581
        %v588 = vadd.f32 %v407, 1.0
        %v589 = vlog2.pop %v588
        %v590 = vmul.f32 %v589, 0.6931472
        %v591 = vmul.f32 -0.5, %v407
        %v592 = vadd.f32 %v591, 1.0
        %v593 = vmul.f32 %v592, %v407
        %v594 = vand.u32 2147483647, %v407
        %vm595 = vcmp.lt.f32.partialorder %v594, 0.0004427343
        %v596 = vsel %vm595, %v593, %v590
        %v597 = vadd.f32 %v409, 1.0
        %v598 = vlog2.pop %v597
        %v599 = vmul.f32 %v598, 0.6931472
        %v600 = vmul.f32 -0.5, %v409
        %v601 = vadd.f32 %v600, 1.0
        %v602 = vmul.f32 %v601, %v409
        %v603 = vand.u32 2147483647, %v409
        %vm604 = vcmp.lt.f32.partialorder %v603, 0.0004427343
        %v605 = vsel %vm604, %v602, %v599
        %v606 = vadd.f32 %v411, 1.0
        %v607 = vlog2.pop %v606
        %v608 = vmul.f32 %v607, 0.6931472
        %v609 = vmul.f32 -0.5, %v411
        %v610 = vadd.f32 %v609, 1.0
        %v611 = vmul.f32 %v610, %v411
        %v612 = vand.u32 2147483647, %v411
        %vm613 = vcmp.lt.f32.partialorder %v612, 0.0004427343
        %v614 = vsel %vm613, %v611, %v608
        %v615 = vadd.f32 %v413, 1.0
        %v616 = vlog2.pop %v615
        %v617 = vmul.f32 %v616, 0.6931472
        %v618 = vmul.f32 -0.5, %v413
        %v619 = vadd.f32 %v618, 1.0
        %v620 = vmul.f32 %v619, %v413
        %v621 = vand.u32 2147483647, %v413
        %vm622 = vcmp.lt.f32.partialorder %v621, 0.0004427343
        %v623 = vsel %vm622, %v620, %v617
        %v624 = vadd.f32 %v415, 1.0
        %v625 = vlog2.pop %v624
        %v626 = vmul.f32 %v625, 0.6931472
        %v627 = vmul.f32 -0.5, %v415
        %v628 = vadd.f32 %v627, 1.0
        %v629 = vmul.f32 %v628, %v415
        %v630 = vand.u32 2147483647, %v415
        %vm631 = vcmp.lt.f32.partialorder %v630, 0.0004427343
        %v632 = vsel %vm631, %v629, %v626
        %v633 = vadd.f32 %v417, 1.0
        %v634 = vlog2.pop %v633
        %v635 = vmul.f32 %v634, 0.6931472
        %v636 = vmul.f32 -0.5, %v417
        %v637 = vadd.f32 %v636, 1.0
        %v638 = vmul.f32 %v637, %v417
        %v639 = vand.u32 2147483647, %v417
        %vm640 = vcmp.lt.f32.partialorder %v639, 0.0004427343
        %v641 = vsel %vm640, %v638, %v635
        %v642 = vadd.f32 %v419, 1.0
        %v643 = vlog2.pop %v642
        %v644 = vmul.f32 %v643, 0.6931472
        %v645 = vmul.f32 -0.5, %v419
        %v646 = vadd.f32 %v645, 1.0
        %v647 = vmul.f32 %v646, %v419
        %v648 = vand.u32 2147483647, %v419
        %vm649 = vcmp.lt.f32.partialorder %v648, 0.0004427343
        %v650 = vsel %vm649, %v647, %v644
        %v651 = vadd.f32 %v421, 1.0
        %v652 = vlog2.pop %v651
        %v653 = vmul.f32 %v652, 0.6931472
        %v654 = vmul.f32 -0.5, %v421
        %v655 = vadd.f32 %v654, 1.0
        %v656 = vmul.f32 %v655, %v421
        %v657 = vand.u32 2147483647, %v421
        %vm658 = vcmp.lt.f32.partialorder %v657, 0.0004427343
        %v659 = vsel %vm658, %v656, %v653
        %v660 = vadd.f32 %v423, 1.0
        %v661 = vlog2.pop %v660
        %v662 = vmul.f32 %v661, 0.6931472
        %v663 = vmul.f32 -0.5, %v423
        %v664 = vadd.f32 %v663, 1.0
        %v665 = vmul.f32 %v664, %v423
        %v666 = vand.u32 2147483647, %v423
        %vm667 = vcmp.lt.f32.partialorder %v666, 0.0004427343
        %v668 = vsel %vm667, %v665, %v662
        %v669 = vadd.f32 %v425, 1.0
        %v670 = vlog2.pop %v669
        %v671 = vmul.f32 %v670, 0.6931472
        %v672 = vmul.f32 -0.5, %v425
        %v673 = vadd.f32 %v672, 1.0
        %v674 = vmul.f32 %v673, %v425
        %v675 = vand.u32 2147483647, %v425
        %vm676 = vcmp.lt.f32.partialorder %v675, 0.0004427343
        %v677 = vsel %vm676, %v674, %v671
        %v678 = vadd.f32 %v427, 1.0
        %v679 = vlog2.pop %v678
        %v680 = vmul.f32 %v679, 0.6931472
        %v681 = vmul.f32 -0.5, %v427
        %v682 = vadd.f32 %v681, 1.0
        %v683 = vmul.f32 %v682, %v427
        %v684 = vand.u32 2147483647, %v427
        %vm685 = vcmp.lt.f32.partialorder %v684, 0.0004427343
        %v686 = vsel %vm685, %v683, %v680
        %v687 = vadd.f32 %v429, 1.0
        %v688 = vlog2.pop %v687
        %v689 = vmul.f32 %v688, 0.6931472
        %v690 = vmul.f32 -0.5, %v429
        %v691 = vadd.f32 %v690, 1.0
        %v692 = vmul.f32 %v691, %v429
        %v693 = vand.u32 2147483647, %v429
        %vm694 = vcmp.lt.f32.partialorder %v693, 0.0004427343
        %v695 = vsel %vm694, %v692, %v689
        %v696 = vadd.f32 %v431, 1.0
        %v697 = vlog2.pop %v696
        %v698 = vmul.f32 %v697, 0.6931472
        %v699 = vmul.f32 -0.5, %v431
        %v700 = vadd.f32 %v699, 1.0
        %v701 = vmul.f32 %v700, %v431
        %v702 = vand.u32 2147483647, %v431
        %vm703 = vcmp.lt.f32.partialorder %v702, 0.0004427343
        %v704 = vsel %vm703, %v701, %v698
        %v705 = vadd.f32 %v433, 1.0
        %v706 = vlog2.pop %v705
        %v707 = vmul.f32 %v706, 0.6931472
        %v708 = vmul.f32 -0.5, %v433
        %v709 = vadd.f32 %v708, 1.0
        %v710 = vmul.f32 %v709, %v433
        %v711 = vand.u32 2147483647, %v433
        %vm712 = vcmp.lt.f32.partialorder %v711, 0.0004427343
        %v713 = vsel %vm712, %v710, %v707
        %v714 = vadd.f32 %v435, 1.0
        %v715 = vlog2.pop %v714
        %v716 = vmul.f32 %v715, 0.6931472
        %v717 = vmul.f32 -0.5, %v435
        %v718 = vadd.f32 %v717, 1.0
        %v719 = vmul.f32 %v718, %v435
        %v720 = vand.u32 2147483647, %v435
        %vm721 = vcmp.lt.f32.partialorder %v720, 0.0004427343
        %v722 = vsel %vm721, %v719, %v716
        %v723 = vadd.f32 %v437, 1.0
        %v724 = vlog2.pop %v723
        %v725 = vmul.f32 %v724, 0.6931472
        %v726 = vmul.f32 -0.5, %v437
        %v727 = vadd.f32 %v726, 1.0
        %v728 = vmul.f32 %v727, %v437
        %v729 = vand.u32 2147483647, %v437
        %vm730 = vcmp.lt.f32.partialorder %v729, 0.0004427343
        %v731 = vsel %vm730, %v728, %v725
        %v732 = vadd.f32 %v439, 1.0
        %v733 = vlog2.pop %v732
        %v734 = vmul.f32 %v733, 0.6931472
        %v735 = vmul.f32 -0.5, %v439
        %v736 = vadd.f32 %v735, 1.0
        %v737 = vmul.f32 %v736, %v439
        %v738 = vand.u32 2147483647, %v439
        %vm739 = vcmp.lt.f32.partialorder %v738, 0.0004427343
        %v740 = vsel %vm739, %v737, %v734
        %v741 = vadd.f32 %v441, 1.0
        %v742 = vlog2.pop %v741
        %v743 = vmul.f32 %v742, 0.6931472
        %v744 = vmul.f32 -0.5, %v441
        %v745 = vadd.f32 %v744, 1.0
        %v746 = vmul.f32 %v745, %v441
        %v747 = vand.u32 2147483647, %v441
        %vm748 = vcmp.lt.f32.partialorder %v747, 0.0004427343
        %v749 = vsel %vm748, %v746, %v743
        %v750 = vadd.f32 %v443, 1.0
        %v751 = vlog2.pop %v750
        %v752 = vmul.f32 %v751, 0.6931472
        %v753 = vmul.f32 -0.5, %v443
        %v754 = vadd.f32 %v753, 1.0
        %v755 = vmul.f32 %v754, %v443
        %v756 = vand.u32 2147483647, %v443
        %vm757 = vcmp.lt.f32.partialorder %v756, 0.0004427343
        %v758 = vsel %vm757, %v755, %v752
        %v759 = vadd.f32 %v445, 1.0
        %v760 = vlog2.pop %v759
        %v761 = vmul.f32 %v760, 0.6931472
        %v762 = vmul.f32 -0.5, %v445
        %v763 = vadd.f32 %v762, 1.0
        %v764 = vmul.f32 %v763, %v445
        %v765 = vand.u32 2147483647, %v445
        %vm766 = vcmp.lt.f32.partialorder %v765, 0.0004427343
        %v767 = vsel %vm766, %v764, %v761
        %v768 = vadd.f32 %v447, 1.0
        %v769 = vlog2.pop %v768
        %v770 = vmul.f32 %v769, 0.6931472
        %v771 = vmul.f32 -0.5, %v447
        %v772 = vadd.f32 %v771, 1.0
        %v773 = vmul.f32 %v772, %v447
        %v774 = vand.u32 2147483647, %v447
        %vm775 = vcmp.lt.f32.partialorder %v774, 0.0004427343
        %v776 = vsel %vm775, %v773, %v770
        %v777 = vadd.f32 %v449, 1.0
        %v778 = vlog2.pop %v777
        %v779 = vmul.f32 %v778, 0.6931472
        %v780 = vmul.f32 -0.5, %v449
        %v781 = vadd.f32 %v780, 1.0
        %v782 = vmul.f32 %v781, %v449
        %v783 = vand.u32 2147483647, %v449
        %vm784 = vcmp.lt.f32.partialorder %v783, 0.0004427343
        %v785 = vsel %vm784, %v782, %v779
        %v786 = vadd.f32 %v506, %v542
        %v787 = vadd.f32 %v507, %v551
        %v788 = vadd.f32 %v508, %v560
        %v789 = vadd.f32 %v509, %v569
        %v790 = vadd.f32 %v510, %v578
        %v791 = vadd.f32 %v511, %v587
        %v792 = vadd.f32 %v512, %v596
        %v793 = vadd.f32 %v513, %v605
        %v794 = vadd.f32 %v514, %v614
        %v795 = vadd.f32 %v515, %v623
        %v796 = vadd.f32 %v516, %v632
        %v797 = vadd.f32 %v517, %v641
        %v798 = vadd.f32 %v518, %v650
        %v799 = vadd.f32 %v519, %v659
        %v800 = vadd.f32 %v520, %v668
        %v801 = vadd.f32 %v521, %v677
        %v802 = vadd.f32 %v522, %v686
        %v803 = vadd.f32 %v523, %v695
        %v804 = vadd.f32 %v524, %v704
        %v805 = vadd.f32 %v525, %v713
        %v806 = vadd.f32 %v526, %v722
        %v807 = vadd.f32 %v527, %v731
        %v808 = vadd.f32 %v528, %v740
        %v809 = vadd.f32 %v529, %v749
        %v810 = vadd.f32 %v530, %v758
        %v811 = vadd.f32 %v531, %v767
        %v812 = vadd.f32 %v532, %v776
        %v813 = vadd.f32 %v533, %v785
        %v814 = vadd.f32 %v395, 1.0
        %v815 = vadd.f32 %v397, 1.0
        %v816 = vadd.f32 %v399, 1.0
        %v817 = vadd.f32 %v401, 1.0
        %v818 = vadd.f32 %v403, 1.0
        %v819 = vadd.f32 %v405, 1.0
        %v820 = vadd.f32 %v407, 1.0
        %v821 = vadd.f32 %v409, 1.0
        %v822 = vadd.f32 %v411, 1.0
        %v823 = vadd.f32 %v413, 1.0
        %v824 = vadd.f32 %v415, 1.0
        %v825 = vadd.f32 %v417, 1.0
        %v826 = vadd.f32 %v419, 1.0
        %v827 = vadd.f32 %v421, 1.0
        %v828 = vadd.f32 %v423, 1.0
        %v829 = vadd.f32 %v425, 1.0
        %v830 = vadd.f32 %v427, 1.0
        %v831 = vadd.f32 %v429, 1.0
        %v832 = vadd.f32 %v431, 1.0
        %v833 = vadd.f32 %v433, 1.0
        %v834 = vadd.f32 %v435, 1.0
        %v835 = vadd.f32 %v437, 1.0
        %v836 = vadd.f32 %v439, 1.0
        %v837 = vadd.f32 %v441, 1.0
        %v838 = vadd.f32 %v443, 1.0
        %v839 = vadd.f32 %v445, 1.0
        %v840 = vadd.f32 %v447, 1.0
        %v841 = vadd.f32 %v449, 1.0
        %v842 = vrcp.pop %v814
        %v843 = vrcp.pop %v815
        %v844 = vrcp.pop %v816
        %v845 = vrcp.pop %v817
        %v846 = vrcp.pop %v818
        %v847 = vrcp.pop %v819
        %v848 = vrcp.pop %v820
        %v849 = vrcp.pop %v821
        %v850 = vrcp.pop %v822
        %v851 = vrcp.pop %v823
        %v852 = vrcp.pop %v824
        %v853 = vrcp.pop %v825
        %v854 = vrcp.pop %v826
        %v855 = vrcp.pop %v827
        %v856 = vrcp.pop %v828
        %v857 = vrcp.pop %v829
        %v858 = vrcp.pop %v830
        %v859 = vrcp.pop %v831
        %v860 = vrcp.pop %v832
        %v861 = vrcp.pop %v833
        %v862 = vrcp.pop %v834
        %v863 = vrcp.pop %v835
        %v864 = vrcp.pop %v836
        %v865 = vrcp.pop %v837
        %v866 = vrcp.pop %v838
        %v867 = vrcp.pop %v839
        %v868 = vrcp.pop %v840
        %v869 = vrcp.pop %v841
        %vm870 = vcmp.ge.f32.partialorder %v268, 0.0
        %vm871 = vcmp.ge.f32.partialorder %v269, 0.0
        %vm872 = vcmp.ge.f32.partialorder %v270, 0.0
        %vm873 = vcmp.ge.f32.partialorder %v271, 0.0
        %vm874 = vcmp.ge.f32.partialorder %v272, 0.0
        %vm875 = vcmp.ge.f32.partialorder %v273, 0.0
        %vm876 = vcmp.ge.f32.partialorder %v274, 0.0
        %vm877 = vcmp.ge.f32.partialorder %v275, 0.0
        %vm878 = vcmp.ge.f32.partialorder %v276, 0.0
        %vm879 = vcmp.ge.f32.partialorder %v277, 0.0
        %vm880 = vcmp.ge.f32.partialorder %v278, 0.0
        %vm881 = vcmp.ge.f32.partialorder %v279, 0.0
        %vm882 = vcmp.ge.f32.partialorder %v280, 0.0
        %vm883 = vcmp.ge.f32.partialorder %v281, 0.0
        %vm884 = vcmp.ge.f32.partialorder %v282, 0.0
        %vm885 = vcmp.ge.f32.partialorder %v283, 0.0
        %vm886 = vcmp.ge.f32.partialorder %v284, 0.0
        %vm887 = vcmp.ge.f32.partialorder %v285, 0.0
        %vm888 = vcmp.ge.f32.partialorder %v286, 0.0
        %vm889 = vcmp.ge.f32.partialorder %v287, 0.0
        %vm890 = vcmp.ge.f32.partialorder %v288, 0.0
        %vm891 = vcmp.ge.f32.partialorder %v289, 0.0
        %vm892 = vcmp.ge.f32.partialorder %v290, 0.0
        %vm893 = vcmp.ge.f32.partialorder %v291, 0.0
        %vm894 = vcmp.ge.f32.partialorder %v292, 0.0
        %vm895 = vcmp.ge.f32.partialorder %v293, 0.0
        %vm896 = vcmp.ge.f32.partialorder %v294, 0.0
        %vm897 = vcmp.ge.f32.partialorder %v295, 0.0
        %v898 = vmul.f32 %v395, %v842
        %v899 = vmul.f32 %v397, %v843
        %v900 = vmul.f32 %v399, %v844
        %v901 = vmul.f32 %v401, %v845
        %v902 = vmul.f32 %v403, %v846
        %v903 = vmul.f32 %v405, %v847
        %v904 = vmul.f32 %v407, %v848
        %v905 = vmul.f32 %v409, %v849
        %v906 = vmul.f32 %v411, %v850
        %v907 = vmul.f32 %v413, %v851
        %v908 = vmul.f32 %v415, %v852
        %v909 = vmul.f32 %v417, %v853
        %v910 = vmul.f32 %v419, %v854
        %v911 = vmul.f32 %v421, %v855
        %v912 = vmul.f32 %v423, %v856
        %v913 = vmul.f32 %v425, %v857
        %v914 = vmul.f32 %v427, %v858
        %v915 = vmul.f32 %v429, %v859
        %v916 = vmul.f32 %v431, %v860
        %v917 = vmul.f32 %v433, %v861
        %v918 = vmul.f32 %v435, %v862
        %v919 = vmul.f32 %v437, %v863
        %v920 = vmul.f32 %v439, %v864
        %v921 = vmul.f32 %v441, %v865
        %v922 = vmul.f32 %v443, %v866
        %v923 = vmul.f32 %v445, %v867
        %v924 = vmul.f32 %v447, %v868
        %v925 = vmul.f32 %v449, %v869
        %v926 = vsel %vm870, %v842, %v898
        %v927 = vsel %vm871, %v843, %v899
        %v928 = vsel %vm872, %v844, %v900
        %v929 = vsel %vm873, %v845, %v901
        %v930 = vsel %vm874, %v846, %v902
        %v931 = vsel %vm875, %v847, %v903
        %v932 = vsel %vm876, %v848, %v904
        %v933 = vsel %vm877, %v849, %v905
        %v934 = vsel %vm878, %v850, %v906
        %v935 = vsel %vm879, %v851, %v907
        %v936 = vsel %vm880, %v852, %v908
        %v937 = vsel %vm881, %v853, %v909
        %v938 = vsel %vm882, %v854, %v910
        %v939 = vsel %vm883, %v855, %v911
        %v940 = vsel %vm884, %v856, %v912
        %v941 = vsel %vm885, %v857, %v913
        %v942 = vsel %vm886, %v858, %v914
        %v943 = vsel %vm887, %v859, %v915
        %v944 = vsel %vm888, %v860, %v916
        %v945 = vsel %vm889, %v861, %v917
        %v946 = vsel %vm890, %v862, %v918
        %v947 = vsel %vm891, %v863, %v919
        %v948 = vsel %vm892, %v864, %v920
        %v949 = vsel %vm893, %v865, %v921
        %v950 = vsel %vm894, %v866, %v922
        %v951 = vsel %vm895, %v867, %v923
        %v952 = vsel %vm896, %v868, %v924
        %v953 = vsel %vm897, %v869, %v925
        %v954 = vadd.f32 %v786, %v787
        %v955 = vadd.f32 %v954, %v788
        %v956 = vadd.f32 %v955, %v789
        %v957 = vadd.f32 %v956, %v790
        %v958 = vadd.f32 %v957, %v791
        %v959 = vadd.f32 %v958, %v792
        %v960 = vadd.f32 %v959, %v793
        %v961 = vadd.f32 %v960, %v794
        %v962 = vadd.f32 %v961, %v795
        %v963 = vadd.f32 %v962, %v796
        %v964 = vadd.f32 %v963, %v797
        %v965 = vadd.f32 %v964, %v798
        %v966 = vadd.f32 %v965, %v799
        %v967 = vadd.f32 %v966, %v800
        %v968 = vadd.f32 %v967, %v801
        %v969 = vadd.f32 %v968, %v802
        %v970 = vadd.f32 %v969, %v803
        %v971 = vadd.f32 %v970, %v804
        %v972 = vadd.f32 %v971, %v805
        %v973 = vadd.f32 %v972, %v806
        %v974 = vadd.f32 %v973, %v807
        %v975 = vadd.f32 %v974, %v808
        %v976 = vadd.f32 %v975, %v809
        %vm977 = vcmask 1040384
        %v978 = vsel %vm977, %v810, 0.0
        %v979 = vadd.f32 %v976, %v978
        %v980 = vsel %vm977, %v811, 0.0
        %v981 = vadd.f32 %v979, %v980
        %v982 = vsel %vm977, %v812, 0.0
        %v983 = vadd.f32 %v981, %v982
        %v984 = vsel %vm977, %v813, 0.0
        %v985 = vadd.f32 %v983, %v984
        %986 = vadd.xlane.f32.xlu0 %v985
        %v987 = vpop.xlane.xlu0 %986
        %v988 = vrot.slane %v987, 4
        %v989 = vadd.f32 %v987, %v988
        %v990 = vrot.slane %v989, 2
        %v991 = vadd.f32 %v989, %v990
        %v992 = vrot.slane %v991, 1
        %v993 = vadd.f32 %v991, %v992
        %s994 = vtos %v993
        %v995 = vmul.f32 %v926, %v310
        %v996 = vmul.f32 %v927, %v311
        %v997 = vmul.f32 %v928, %v312
        %v998 = vmul.f32 %v929, %v313
        %v999 = vmul.f32 %v930, %v314
        %v1000 = vmul.f32 %v931, %v315
        %v1001 = vmul.f32 %v932, %v316
        %v1002 = vmul.f32 %v933, %v317
        %v1003 = vmul.f32 %v934, %v318
        %v1004 = vmul.f32 %v935, %v319
        %v1005 = vmul.f32 %v936, %v320
        %v1006 = vmul.f32 %v937, %v321
        %v1007 = vmul.f32 %v938, %v322
        %v1008 = vmul.f32 %v939, %v323
        %v1009 = vmul.f32 %v940, %v324
        %v1010 = vmul.f32 %v941, %v325
        %v1011 = vmul.f32 %v942, %v326
        %v1012 = vmul.f32 %v943, %v327
        %v1013 = vmul.f32 %v944, %v328
        %v1014 = vmul.f32 %v945, %v329
        %v1015 = vmul.f32 %v946, %v330
        %v1016 = vmul.f32 %v947, %v331
        %v1017 = vmul.f32 %v948, %v332
        %v1018 = vmul.f32 %v949, %v333
        %v1019 = vmul.f32 %v950, %v334
        %v1020 = vmul.f32 %v951, %v335
        %v1021 = vmul.f32 %v952, %v336
        %v1022 = vmul.f32 %v953, %v337
        %v1023 = vadd.f32 %v995, %v996
        %v1024 = vadd.f32 %v1023, %v997
        %v1025 = vadd.f32 %v1024, %v998
        %v1026 = vadd.f32 %v1025, %v999
        %v1027 = vadd.f32 %v1026, %v1000
        %v1028 = vadd.f32 %v1027, %v1001
        %v1029 = vadd.f32 %v1028, %v1002
        %v1030 = vadd.f32 %v1029, %v1003
        %v1031 = vadd.f32 %v1030, %v1004
        %v1032 = vadd.f32 %v1031, %v1005
        %v1033 = vadd.f32 %v1032, %v1006
        %v1034 = vadd.f32 %v1033, %v1007
        %v1035 = vadd.f32 %v1034, %v1008
        %v1036 = vadd.f32 %v1035, %v1009
        %v1037 = vadd.f32 %v1036, %v1010
        %v1038 = vadd.f32 %v1037, %v1011
        %v1039 = vadd.f32 %v1038, %v1012
        %v1040 = vadd.f32 %v1039, %v1013
        %v1041 = vadd.f32 %v1040, %v1014
        %v1042 = vadd.f32 %v1041, %v1015
        %v1043 = vadd.f32 %v1042, %v1016
        %v1044 = vadd.f32 %v1043, %v1017
        %v1045 = vadd.f32 %v1044, %v1018
        %v1046 = vsel %vm977, %v1019, 0.0
        %v1047 = vadd.f32 %v1045, %v1046
        %v1048 = vsel %vm977, %v1020, 0.0
        %v1049 = vadd.f32 %v1047, %v1048
        %v1050 = vsel %vm977, %v1021, 0.0
        %v1051 = vadd.f32 %v1049, %v1050
        %v1052 = vsel %vm977, %v1022, 0.0
        %v1053 = vadd.f32 %v1051, %v1052
        %1054 = vadd.xlane.f32.xlu0 %v1053
        %v1055 = vpop.xlane.xlu0 %1054
        %v1056 = vrot.slane %v1055, 4
        %v1057 = vadd.f32 %v1055, %v1056
        %v1058 = vrot.slane %v1057, 2
        %v1059 = vadd.f32 %v1057, %v1058
        %v1060 = vrot.slane %v1059, 1
        %v1061 = vadd.f32 %v1059, %v1060
        %s1062 = vtos %v1061
        %v1063 = vadd.f32 %v926, %v310
        %v1064 = vadd.f32 %v927, %v311
        %v1065 = vadd.f32 %v928, %v312
        %v1066 = vadd.f32 %v929, %v313
        %v1067 = vadd.f32 %v930, %v314
        %v1068 = vadd.f32 %v931, %v315
        %v1069 = vadd.f32 %v932, %v316
        %v1070 = vadd.f32 %v933, %v317
        %v1071 = vadd.f32 %v934, %v318
        %v1072 = vadd.f32 %v935, %v319
        %v1073 = vadd.f32 %v936, %v320
        %v1074 = vadd.f32 %v937, %v321
        %v1075 = vadd.f32 %v938, %v322
        %v1076 = vadd.f32 %v939, %v323
        %v1077 = vadd.f32 %v940, %v324
        %v1078 = vadd.f32 %v941, %v325
        %v1079 = vadd.f32 %v942, %v326
        %v1080 = vadd.f32 %v943, %v327
        %v1081 = vadd.f32 %v944, %v328
        %v1082 = vadd.f32 %v945, %v329
        %v1083 = vadd.f32 %v946, %v330
        %v1084 = vadd.f32 %v947, %v331
        %v1085 = vadd.f32 %v948, %v332
        %v1086 = vadd.f32 %v949, %v333
        %v1087 = vadd.f32 %v950, %v334
        %v1088 = vadd.f32 %v951, %v335
        %v1089 = vadd.f32 %v952, %v336
        %v1090 = vadd.f32 %v953, %v337
        %v1091 = vadd.f32 %v1063, %v1064
        %v1092 = vadd.f32 %v1091, %v1065
        %v1093 = vadd.f32 %v1092, %v1066
        %v1094 = vadd.f32 %v1093, %v1067
        %v1095 = vadd.f32 %v1094, %v1068
        %v1096 = vadd.f32 %v1095, %v1069
        %v1097 = vadd.f32 %v1096, %v1070
        %v1098 = vadd.f32 %v1097, %v1071
        %v1099 = vadd.f32 %v1098, %v1072
        %v1100 = vadd.f32 %v1099, %v1073
        %v1101 = vadd.f32 %v1100, %v1074
        %v1102 = vadd.f32 %v1101, %v1075
        %v1103 = vadd.f32 %v1102, %v1076
        %v1104 = vadd.f32 %v1103, %v1077
        %v1105 = vadd.f32 %v1104, %v1078
        %v1106 = vadd.f32 %v1105, %v1079
        %v1107 = vadd.f32 %v1106, %v1080
        %v1108 = vadd.f32 %v1107, %v1081
        %v1109 = vadd.f32 %v1108, %v1082
        %v1110 = vadd.f32 %v1109, %v1083
        %v1111 = vadd.f32 %v1110, %v1084
        %v1112 = vadd.f32 %v1111, %v1085
        %v1113 = vadd.f32 %v1112, %v1086
        %v1114 = vsel %vm977, %v1087, 0.0
        %v1115 = vadd.f32 %v1113, %v1114
        %v1116 = vsel %vm977, %v1088, 0.0
        %v1117 = vadd.f32 %v1115, %v1116
        %v1118 = vsel %vm977, %v1089, 0.0
        %v1119 = vadd.f32 %v1117, %v1118
        %v1120 = vsel %vm977, %v1090, 0.0
        %v1121 = vadd.f32 %v1119, %v1120
        %1122 = vadd.xlane.f32.xlu0 %v1121
        %v1123 = vpop.xlane.xlu0 %1122
        %v1124 = vrot.slane %v1123, 4
        %v1125 = vadd.f32 %v1123, %v1124
        %v1126 = vrot.slane %v1125, 2
        %v1127 = vadd.f32 %v1125, %v1126
        %v1128 = vrot.slane %v1127, 1
        %v1129 = vadd.f32 %v1127, %v1128
        %s1130 = vtos %v1129
        %v1131 = vlaneseq
        %v1132 = vand.u32 %v1131, 127
        %v1133 = vld [vmem:[%s218] sm:$0xff]
        %vm1134 = vcmp.eq.s32.totalorder %v1132, 0
        %v1135 = vstv %s994
        %v1136 = vsel %vm1134, %v1135, 0.0
        %vm1137 = vcmp.eq.s32.totalorder %v1132, 1
        %v1138 = vstv %s1062
        %v1139 = vsel %vm1137, %v1138, 0.0
        %v1140 = vadd.f32 %v1136, %v1139
        %vm1141 = vcmp.eq.s32.totalorder %v1132, 2
        %v1142 = vstv %s1130
        %v1143 = vsel %vm1141, %v1142, 0.0
        %v1144 = vadd.f32 %v1140, %v1143
        %v1145 = vadd.f32 %v1133, %v1144
        %1146 = vst [vmem:[%s218] sm:$0xff] %v1145
        %s1147 = sand.u32 %s105, 1
        %s1148 = scalar_lea.sflag [#allocation3], %s1147
        %s1149 = sand.u32 %s105, 1
        %s1150 = smul.addr %s1149, 8
        %s1151 = scalar_lea.vmem [#allocation2], %s1150
        // Predicated region
        $region33: #{tpu_custom_call.1} parent=27 // pred_check
          %p1152 = pneg %p115
        $region34: #{tpu_custom_call.1} parent=27 // pred_check_branch
          %1154 = sbr.rel (%p1152) target = $region36
        $region35: #{tpu_custom_call.1} parent=27 // pred_region
          %1156 = vsyncadd %s1148, 0
          %s1157 = smul.addr %s21, 2
          %s1158 = sadd.s32 %s22, %s1157
          %s1159 = smul.addr %s1158, 8
          %s1160 = scalar_lea.hbm %s2, %s1159
          %s1162 = sshll.u32 %s1151, 4
          %s1163 = int_to_ptr.vmem [resolvable:$true] %s1162
          %s1164 = sshll.u32 %s1160, 4
          %s1165 = int_to_ptr.hbm [resolvable:$true] %s1164
          %1167 = dma.vmem_to_hbm [thread:$0]  %s1163, 128, %s1165, %s1148
        $region36: #{tpu_custom_call.1} parent=27 // pred_fallthru
          _
      $region28: #{tpu_custom_call.1} parent=5 // pred_fallthru
        _
      %p1168 = scmp.le.s32.totalorder 2, %s11
      // Predicated region
      $region37: #{tpu_custom_call.1} parent=5 // pred_check
        %p1169 = pneg %p1168
      $region38: #{tpu_custom_call.1} parent=5 // pred_check_branch
        %1171 = sbr.rel (%p1169) target = $region40
      $region39: #{tpu_custom_call.1} parent=5 // pred_region
        %s1172 = ssub.s32 %s11, 2
        // Predicated region
        $region41: #{tpu_custom_call.1} parent=39 // pred_check
          %p1173 = pneg %p121
        $region42: #{tpu_custom_call.1} parent=39 // pred_check_branch
          %1175 = sbr.rel (%p1173) target = $region44
        $region43: #{tpu_custom_call.1} parent=39 // pred_region
          %s1176 = sand.u32 %s106, 1
          %s1177 = scalar_lea.sflag [#allocation3], %s1176
          %s1178 = sand.u32 %s106, 1
          %s1179 = smul.addr %s1178, 8
          %s1180 = scalar_lea.vmem [#allocation2], %s1179
          %1182 = dma.done %s1177, 128
        $region44: #{tpu_custom_call.1} parent=39 // pred_fallthru
          _
      $region40: #{tpu_custom_call.1} parent=5 // pred_fallthru
        _
    $region6: #{tpu_custom_call.1} parent=1 // loop_footer
      %s15 = sadd.s32 1, %s11
    $region7: #{tpu_custom_call.1} parent=1 // loop_footer_branch
      %10 = sbr.rel target = $region3
    $region8: #{tpu_custom_call.1} parent=1 // loop_exit
      _
    %1183 = vsyncpa [#allocation3], 1
    %s1184 = scalar_lea.sflag [#allocation3], 1
    %1185 = vsyncpa %s1184, 1

</llo_original>
